<compile_context>
chip_gen: v7x
topology: tpu7x:2x2x1
jax: 0.10.0
libtpu: 0.0.40
codegen_flags: <defaults>
</compile_context>

<pallas_src>
import jax
import jax.numpy as jnp
from jax.experimental import pallas as pl
from jax.experimental.pallas import tpu as pltpu


def _noise_txt_kernel(x_ref, w_ref, b_ref, o_ref):
    # x_ref: (bm, nz+nt)   w_ref: (nz+nt, 2H)   b_ref: (1, 2H)   o_ref: (bm, 2H)
    acc = jnp.dot(x_ref[...], w_ref[...], preferred_element_type=jnp.float32)
    # single unmasked, lane-dense full-tile store of relu(x @ W + b)
    o_ref[...] = jnp.maximum(acc + b_ref[...], 0.0).astype(o_ref.dtype)


def prepare_noise_txt_params(wz, bz, wt, bt):
    """Build the fused block-diagonal weight and concatenated bias ONCE.

    wz: (nz, H)  bz: (H,)  wt: (nt, H)  bt: (H,)
    Returns w: (nz+nt, 2H), b: (1, 2H) such that
      [z, txt] @ w + b == concat([z @ wz + bz, txt @ wt + bt], axis=1).
    """
    nz, H = wz.shape
    nt = wt.shape[0]
    w = jnp.zeros((nz + nt, 2 * H), wz.dtype)
    w = w.at[:nz, :H].set(wz)
    w = w.at[nz:, H:].set(wt)
    b = jnp.concatenate([bz, bt]).reshape(1, 2 * H)
    return w, b


def noise_txt(txt, z, w, b, *, block_b=128):
    """Fused forward. txt:(B,nt) z:(B,nz) w:(nz+nt,2H) b:(1,2H) -> (B,2H).

    Matches PyTorch: ReLU(cat((prep_noise(z), prep_txt(txt)), dim=1)).
    """
    B, nz = z.shape
    _, nt = txt.shape
    K = nz + nt
    H2 = w.shape[1]

    # Single (B, nz+nt) activation slab feeding one MXU matmul.
    x = jnp.concatenate([z, txt], axis=1)

    bm = B if B <= block_b else block_b
    grid = (pl.cdiv(B, bm),)

    return pl.pallas_call(
        _noise_txt_kernel,
        out_shape=jax.ShapeDtypeStruct((B, H2), jnp.float32),
        grid=grid,
        in_specs=[
            pl.BlockSpec((bm, K), lambda i: (i, 0)),   # activation stream, pipelined
            pl.BlockSpec((K, H2), lambda i: (0, 0)),   # weights resident across grid
            pl.BlockSpec((1, H2), lambda i: (0, 0)),   # bias resident across grid
        ],
        out_specs=pl.BlockSpec((bm, H2), lambda i: (i, 0)),
        compiler_params=pltpu.CompilerParams(
            dimension_semantics=("parallel",)),        # batch axis -> 2 TCs on v7x
    )(x, w, b)


def _init_linear(key, in_features, out_features):
    """Deterministic init mimicking nn.Linear default: U(-1/sqrt(in), 1/sqrt(in)).
    Returns weight pre-transposed to (in_features, out_features) plus bias."""
    k_w, k_b = jax.random.split(key)
    bound = 1.0 / jnp.sqrt(jnp.float32(in_features))
    w = jax.random.uniform(k_w, (in_features, out_features), jnp.float32, -bound, bound)
    b = jax.random.uniform(k_b, (out_features,), jnp.float32, -bound, bound)
    return w, b


if __name__ == "__main__":
    # Small, TPU-friendly config standing in for cfg.GAN.Z_DIM / cfg.GAN.NGF /
    # cfg.TEXT.TXT_EMBEDDING_DIM.
    B = 8        # batch
    nz = 32      # cfg.GAN.Z_DIM
    nt = 32      # cfg.TEXT.TXT_EMBEDDING_DIM
    ngf = 32     # cfg.GAN.NGF  -> hidden H = ngf*4 = 128
    H = ngf * 4

    key = jax.random.PRNGKey(0)
    k_txt, k_z, k_lz, k_lt = jax.random.split(key, 4)

    txt = jax.random.normal(k_txt, (B, nt), jnp.float32)
    z = jax.random.normal(k_z, (B, nz), jnp.float32)

    wz, bz = _init_linear(k_lz, nz, H)   # prep_noise
    wt, bt = _init_linear(k_lt, nt, H)   # prep_txt

    # Fused params built once (outside the per-step call path).
    w_fused, b_fused = prepare_noise_txt_params(wz, bz, wt, bt)
    w_fused = jax.block_until_ready(w_fused)
    b_fused = jax.block_until_ready(b_fused)

    out = noise_txt(txt, z, w_fused, b_fused)
    out = jax.block_until_ready(out)

    # Pure-JAX reference check (original two-Linear + cat + ReLU semantics).
    ref = jnp.concatenate([z @ wz + bz, txt @ wt + bt], axis=1)
    ref = jnp.maximum(ref, 0.0)
    assert out.shape == (B, 2 * H)
    assert jnp.allclose(out, ref, atol=1e-5, rtol=1e-5), "mismatch vs reference"

    # TODO(synk): in a full GAWWN generator this op should be folded into the
    # first downstream kernel as a prologue rather than a standalone pallas_call.
    print("KERNEL_OK")
</pallas_src>

<mosaic_0001>
module attributes {stable_mosaic.version = 11 : i64} {
  func.func @_noise_txt_kernel(%arg0: i32, %arg1: memref<8x64xf32, #tpu.memory_space<vmem>>, %arg2: memref<64x256xf32, #tpu.memory_space<vmem>>, %arg3: memref<1x256xf32, #tpu.memory_space<vmem>>, %arg4: memref<8x256xf32, #tpu.memory_space<vmem>>) attributes {dimension_semantics = [#tpu.dimension_semantics<parallel>], iteration_bounds = array<i64: 1>, scalar_prefetch = 0 : i64, scratch_operands = 0 : i64, tpu.core_type = #tpu.core_type<tc>, window_params = [{transform_indices = @transform_0, window_bounds = array<i64: 8, 64>}, {pipeline_mode = #tpu.pipeline_mode<synchronous>, transform_indices = @transform_1, window_bounds = array<i64: 64, 256>}, {pipeline_mode = #tpu.pipeline_mode<synchronous>, transform_indices = @transform_2, window_bounds = array<i64: 1, 256>}, {transform_indices = @transform_3, window_bounds = array<i64: 8, 256>}]} {
    %c0 = arith.constant 0 : index
    %c0_0 = arith.constant 0 : index
    %0 = vector.load %arg1[%c0, %c0_0] : memref<8x64xf32, #tpu.memory_space<vmem>>, vector<8x64xf32>
    %c0_1 = arith.constant 0 : index
    %c0_2 = arith.constant 0 : index
    %1 = vector.load %arg2[%c0_1, %c0_2] : memref<64x256xf32, #tpu.memory_space<vmem>>, vector<64x256xf32>
    %cst = arith.constant dense<0.000000e+00> : vector<8x256xf32>
    %2 = tpu.matmul %0, %1, %cst {dimension_numbers = #tpu.dot_dimension_numbers<[1], [0], [0], [1], [0, 0, 1, 1], [], []>} : vector<8x64xf32>, vector<64x256xf32>, vector<8x256xf32> -> vector<8x256xf32>
    %c0_3 = arith.constant 0 : index
    %c0_4 = arith.constant 0 : index
    %3 = vector.load %arg3[%c0_3, %c0_4] : memref<1x256xf32, #tpu.memory_space<vmem>>, vector<1x256xf32>
    %4 = vector.broadcast %3 : vector<1x256xf32> to vector<8x256xf32>
    %5 = arith.addf %2, %4 : vector<8x256xf32>
    %cst_5 = arith.constant 0.000000e+00 : f32
    %6 = vector.broadcast %cst_5 : f32 to vector<8x256xf32>
    %7 = arith.maximumf %5, %6 : vector<8x256xf32>
    %c0_6 = arith.constant 0 : index
    %c0_7 = arith.constant 0 : index
    %8 = vector.load %arg4[%c0_6, %c0_7] : memref<8x256xf32, #tpu.memory_space<vmem>>, vector<8x256xf32>
    tpu.vector_store %arg4[%c0_6, %c0_7], %7 {strides = array<i32>} : memref<8x256xf32, #tpu.memory_space<vmem>>, vector<8x256xf32>,
    return
  }
  func.func @transform_0(%arg0: i32) -> (i32, i32) {
    %c0_i32 = arith.constant 0 : i32
    %c0_i32_0 = arith.constant 0 : i32
    return %arg0, %c0_i32 : i32, i32
  }
  func.func @transform_1(%arg0: i32) -> (i32, i32) {
    %c0_i32 = arith.constant 0 : i32
    %c0_i32_0 = arith.constant 0 : i32
    %c0_i32_1 = arith.constant 0 : i32
    return %c0_i32, %c0_i32_0 : i32, i32
  }
  func.func @transform_2(%arg0: i32) -> (i32, i32) {
    %c0_i32 = arith.constant 0 : i32
    %c0_i32_0 = arith.constant 0 : i32
    %c0_i32_1 = arith.constant 0 : i32
    return %c0_i32, %c0_i32_0 : i32, i32
  }
  func.func @transform_3(%arg0: i32) -> (i32, i32) {
    %c0_i32 = arith.constant 0 : i32
    %c0_i32_0 = arith.constant 0 : i32
    return %arg0, %c0_i32 : i32, i32
  }
}

</mosaic_0001>

<llo_original>
// kernel: tpu_custom_call.1
$region0: #{tpu_custom_call.1}
  #allocation0 [shape = 'u32[]', space=smem, size = 0x4, offset = 0x4, fixed_abs, tag = 'smem constant byte address 0x4 - core index']
  #allocation1 [shape = 'u32[144,128]{1,0:T(1,128)}', space=vmem, size = 0x12000, scoped, tag = 'internal scratch']
  %s0 = inlined_call_operand.hbm [shape: f32[8,64], index: 0, kind: input, shape index: {}]
  %s1 = inlined_call_operand.hbm [shape: f32[64,256], index: 1, kind: input, shape index: {}]
  %s2 = inlined_call_operand.vmem [shape: f32[1,256], index: 2, kind: input, shape index: {}]
  %s3 = inlined_call_operand.hbm [shape: f32[8,256], index: 3, kind: output, shape index: {}]
  %s4 = sld [smem:[#allocation0]]
  $region30: #{tpu_custom_call.1} parent=0
    _
  %s6 = ssub.s32 1, %s4
  %s7 = scalar_select 0, %s6, %s4
  $region1: #{tpu_custom_call.1} parent=0
    #allocation2 [shape = 'u8[4096]{0}', space=vmem, size = 0x1000, scoped, tag = 'input window, operand 0, single buffered']
    #allocation3 [shape = 's32[1]{0}', space=sflag, size = 0x4, scoped, tag = 'scoped memory for tpu_custom_call.1']
    #allocation4 [shape = 's32[1]{0}', space=sflag, size = 0x4, scoped, tag = 'scoped memory for tpu_custom_call.1']
    #allocation5 [shape = 'u8[65536]{0}', space=vmem, size = 0x10000, scoped, tag = 'input window, operand 1, single buffered']
    #allocation6 [shape = 's32[1]{0}', space=sflag, size = 0x4, scoped, tag = 'scoped memory for tpu_custom_call.1']
    #allocation7 [shape = 'u8[8192]{0}', space=vmem, size = 0x2000, scoped, tag = 'output window, operand 0, single buffered']
    %8 = vsyncpa [#allocation3], 0
    %9 = vsyncpa [#allocation6], 0
    %10 = vsyncpa [#allocation4], 0
    // Predicated region
    $region2: #{tpu_custom_call.1} parent=1 // pred_check
      _
    $region3: #{tpu_custom_call.1} parent=1 // pred_check_branch
      %12 = sbr.rel (0) target = $region5
    $region4: #{tpu_custom_call.1} parent=1 // pred_region
      %s14 = ssub.s32 128, 128
      %15 = vsyncadd [#allocation3], %s14
      %s17 = sshll.u32 [#allocation2], 4
      %s18 = int_to_ptr.vmem [resolvable:$true] %s17
      %20 = dma.hbm_to_vmem [thread:$0]  %s0, 128, %s18, [#allocation3]
    $region5: #{tpu_custom_call.1} parent=1 // pred_fallthru
      _
    // Predicated region
    $region6: #{tpu_custom_call.1} parent=1 // pred_check
      _
    $region7: #{tpu_custom_call.1} parent=1 // pred_check_branch
      %22 = sbr.rel (0) target = $region9
    $region8: #{tpu_custom_call.1} parent=1 // pred_region
      %s24 = ssub.s32 2048, 2048
      %25 = vsyncadd [#allocation6], %s24
      %s26 = sshll.u32 [#allocation5], 4
      %s27 = int_to_ptr.vmem [resolvable:$true] %s26
      %32 = dma.hbm_to_vmem [thread:$0]  %s1, 2048, %s27, [#allocation6], 256, 256, 16
    $region9: #{tpu_custom_call.1} parent=1 // pred_fallthru
      _
    // Predicated region
    $region10: #{tpu_custom_call.1} parent=1 // pred_check
      _
    $region11: #{tpu_custom_call.1} parent=1 // pred_check_branch
      %34 = sbr.rel (0) target = $region13
    $region12: #{tpu_custom_call.1} parent=1 // pred_region
      _
    $region13: #{tpu_custom_call.1} parent=1 // pred_fallthru
      _
    // Predicated region
    $region14: #{tpu_custom_call.1} parent=1 // pred_check
      _
    $region15: #{tpu_custom_call.1} parent=1 // pred_check_branch
      %36 = sbr.rel (0) target = $region17
    $region16: #{tpu_custom_call.1} parent=1 // pred_region
      %37 = dma.done [#allocation3], 128
    $region17: #{tpu_custom_call.1} parent=1 // pred_fallthru
      _
    // Predicated region
    $region18: #{tpu_custom_call.1} parent=1 // pred_check
      _
    $region19: #{tpu_custom_call.1} parent=1 // pred_check_branch
      %39 = sbr.rel (0) target = $region21
    $region20: #{tpu_custom_call.1} parent=1 // pred_region
      %40 = dma.done [#allocation6], 2048
    $region21: #{tpu_custom_call.1} parent=1 // pred_fallthru
      _
    %v41 = vld [vmem:[#allocation2] sm:$0xff]
    %v42 = vld [vmem:[#allocation5] sm:$0xff]
    %v43 = vld [vmem:[#allocation5 + $0x8] sm:$0xff]
    %v44 = vld [vmem:[#allocation5 + $0x10] sm:$0xff]
    %v45 = vld [vmem:[#allocation5 + $0x18] sm:$0xff]
    %v46 = vld [vmem:[#allocation5 + $0x20] sm:$0xff]
    %v47 = vld [vmem:[#allocation5 + $0x28] sm:$0xff]
    %v48 = vld [vmem:[#allocation5 + $0x30] sm:$0xff]
    %v49 = vld [vmem:[#allocation5 + $0x38] sm:$0xff]
    %v50 = vld [vmem:[#allocation5 + $0x40] sm:$0xff]
    %v51 = vld [vmem:[#allocation5 + $0x48] sm:$0xff]
    %v52 = vld [vmem:[#allocation5 + $0x50] sm:$0xff]
    %v53 = vld [vmem:[#allocation5 + $0x58] sm:$0xff]
    %v54 = vld [vmem:[#allocation5 + $0x60] sm:$0xff]
    %v55 = vld [vmem:[#allocation5 + $0x68] sm:$0xff]
    %v56 = vld [vmem:[#allocation5 + $0x70] sm:$0xff]
    %v57 = vld [vmem:[#allocation5 + $0x78] sm:$0xff]
    %v58 = vld [vmem:[%s2] sm:$0x3]
    %v60 = vlaneseq
    %v61 = vshrl.u32 %v60, 7
    %v62 = vsub.s32 0, %v61
    %v63 = vrot.slane %v58, %v62
    %v64 = vlaneseq
    %v65 = vshrl.u32 %v64, 7
    %v66 = vsub.s32 1, %v65
    %v67 = vrot.slane %v58, %v66
    %vm70 = vcmask 523264
    %v72 = vsel %vm70, %v41, 0
    %74 = vmatprep.subr.mxu0 %v43
    %75 = vmatpush1.msra.mxu0 %v42
    %76 = vmatprep.subr.mxu0 %v45
    %77 = vmatpush1.msra.mxu0 %v44
    %78 = vmatprep.subr.mxu0 %v47
    %79 = vmatpush1.msra.mxu0 %v46
    %80 = vmatprep.subr.mxu0 %v49
    %81 = vmatpush1.msra.mxu0 %v48
    %82 = vmatprep.subr.mxu0 %v51
    %83 = vmatpush1.msra.mxu0 %v50
    %84 = vmatprep.subr.mxu0 %v53
    %85 = vmatpush1.msra.mxu0 %v52
    %86 = vmatprep.subr.mxu0 %v55
    %87 = vmatpush1.msra.mxu0 %v54
    %88 = vmatprep.subr.mxu0 %v57
    %89 = vmatpush1.msra.mxu0 %v56
    %90 = vmatprep.subr.mxu0 0.0
    %91 = vmatpush1.msra.mxu0 0.0
    %92 = vmatprep.subr.mxu0 0.0
    %93 = vmatpush1.msra.mxu0 0.0
    %94 = vmatprep.subr.mxu0 0.0
    %95 = vmatpush1.msra.mxu0 0.0
    %96 = vmatprep.subr.mxu0 0.0
    %97 = vmatpush1.msra.mxu0 0.0
    %98 = vmatprep.subr.mxu0 0.0
    %99 = vmatpush1.msra.mxu0 0.0
    %100 = vmatprep.subr.mxu0 0.0
    %101 = vmatpush1.msra.mxu0 0.0
    %102 = vmatprep.subr.mxu0 0.0
    %103 = vmatpush1.msra.mxu0 0.0
    %104 = vmatprep.subr.mxu0 0.0
    %105 = vmatpush1.msra.mxu0 0.0
    %106 = vmatprep.subr.mxu0 0.0
    %107 = vmatpush1.msra.mxu0 0.0
    %108 = vmatprep.subr.mxu0 0.0
    %109 = vmatpush1.msra.mxu0 0.0
    %110 = vmatprep.subr.mxu0 0.0
    %111 = vmatpush1.msra.mxu0 0.0
    %112 = vmatprep.subr.mxu0 0.0
    %113 = vmatpush1.msra.mxu0 0.0
    %114 = vmatprep.subr.mxu0 0.0
    %115 = vmatpush1.msra.mxu0 0.0
    %116 = vmatprep.subr.mxu0 0.0
    %117 = vmatpush1.msra.mxu0 0.0
    %118 = vmatprep.subr.mxu0 0.0
    %119 = vmatpush1.msra.mxu0 0.0
    %120 = vmatprep.subr.mxu0 0.0
    %121 = vmatpush1.msra.mxu0 0.0
    %122 = vmatprep.subr.mxu0 0.0
    %123 = vmatpush1.msra.mxu0 0.0
    %124 = vmatprep.subr.mxu0 0.0
    %125 = vmatpush1.msra.mxu0 0.0
    %126 = vmatprep.subr.mxu0 0.0
    %127 = vmatpush1.msra.mxu0 0.0
    %128 = vmatprep.subr.mxu0 0.0
    %129 = vmatpush1.msra.mxu0 0.0
    %130 = vmatprep.subr.mxu0 0.0
    %131 = vmatpush1.msra.mxu0 0.0
    %132 = vmatprep.subr.mxu0 0.0
    %133 = vmatpush1.msra.mxu0 0.0
    %134 = vmatprep.subr.mxu0 0.0
    %135 = vmatpush1.msra.mxu0 0.0
    %136 = vmatprep.subr.mxu0 0.0
    %137 = vmatpush1.msra.mxu0 0.0
    %138 = vmatprep.mubr.f32.mxu0 0.0
    %139 = vmatmul.mubr.f32.gmra.mrb[0].mxu0 %v72
    %v140 = vpop.f32.mrb[0].mxu0
    %v141 = vadd.f32 %v63, %v140
    %v142 = vpop.f32.mrb[0].mxu0
    %v143 = vadd.f32 %v67, %v142
    %144 = vdwg.mxu0
    %v145 = vmax.f32 %v141, 0.0
    %v146 = vmax.f32 %v143, 0.0
    %147 = vst [vmem:[#allocation7] sm:$0xff] %v145
    %148 = vst [vmem:[#allocation7 + $0x8] sm:$0xff] %v146
    // Predicated region
    $region22: #{tpu_custom_call.1} parent=1 // pred_check
      _
    $region23: #{tpu_custom_call.1} parent=1 // pred_check_branch
      %150 = sbr.rel (0) target = $region25
    $region24: #{tpu_custom_call.1} parent=1 // pred_region
      %s152 = ssub.s32 256, 256
      %153 = vsyncadd [#allocation4], %s152
      %s155 = sshll.u32 [#allocation7], 4
      %s156 = int_to_ptr.vmem [resolvable:$true] %s155
      %158 = dma.vmem_to_hbm [thread:$0]  %s156, 256, %s3, [#allocation4]
    $region25: #{tpu_custom_call.1} parent=1 // pred_fallthru
      _
    // Predicated region
    $region26: #{tpu_custom_call.1} parent=1 // pred_check
      _
    $region27: #{tpu_custom_call.1} parent=1 // pred_check_branch
      %160 = sbr.rel (0) target = $region29
    $region28: #{tpu_custom_call.1} parent=1 // pred_region
      %161 = dma.done [#allocation4], 256
    $region29: #{tpu_custom_call.1} parent=1 // pred_fallthru
      _
    %162 = vsyncpa [#allocation3], 1
    %163 = vsyncpa [#allocation6], 1
    %164 = vsyncpa [#allocation4], 1

</llo_original>
